<compile_context>
chip_gen: v6e
topology: v6e:2x2x1
jax: 0.10.0
libtpu: 0.0.40
codegen_flags: <defaults>
</compile_context>

<pallas_src>
import functools

import jax
import jax.numpy as jnp
from jax import lax
from jax.experimental import pallas as pl
from jax.experimental.pallas import tpu as pltpu


def _round_up(x, m):
    return (x + m - 1) // m * m


def _stats_kernel(x_ref, gamma_ref, beta_ref, scale_ref, bias_ref,
                  sum_acc, sumsq_acc, *, eps, n_points):
    """Accumulate per-channel sum / sumsq over N tiles; finalize scale/bias."""
    i = pl.program_id(1)  # N-tile index (reduction axis, last in grid)

    @pl.when(i == 0)
    def _():
        sum_acc[...] = jnp.zeros_like(sum_acc)
        sumsq_acc[...] = jnp.zeros_like(sumsq_acc)

    x = x_ref[...].astype(jnp.float32)            # (tile_n, tile_c)
    # Single sweep over the tile: sum and sum-of-squares together.
    sum_acc[...] += jnp.sum(x, axis=0, keepdims=True)
    sumsq_acc[...] += jnp.sum(x * x, axis=0, keepdims=True)

    @pl.when(i == pl.num_programs(1) - 1)
    def _():
        inv_n = 1.0 / float(n_points)
        mean = sum_acc[...] * inv_n
        # Biased variance (what BatchNorm1d normalizes with); clamp >= 0 to
        # guard against catastrophic cancellation in sumsq/n - mean^2.
        var = jnp.maximum(sumsq_acc[...] * inv_n - mean * mean, 0.0)
        inv_std = lax.rsqrt(var + eps)
        scale = gamma_ref[...].astype(jnp.float32) * inv_std
        bias = beta_ref[...].astype(jnp.float32) - mean * scale
        scale_ref[...] = scale
        bias_ref[...] = bias


def _normalize_kernel(x_ref, scale_ref, bias_ref, o_ref):
    """Elementwise y = x * scale + bias with per-channel (1, tile_c) params."""
    x = x_ref[...].astype(jnp.float32)
    o_ref[...] = (x * scale_ref[...] + bias_ref[...]).astype(o_ref.dtype)


def minkowski_batch_norm(features, gamma, beta, *, eps=1e-5,
                         tile_n=1024, tile_c=512):
    """Forward of MinkowskiBatchNorm (training-mode BatchNorm1d) on (N, C)."""
    n, c = features.shape
    assert n > 0, "BatchNorm over an empty sparse tensor is undefined"
    out_dtype = features.dtype

    # Channel axis: pad to a multiple of 128 (lane-dense, unmasked stores) and
    # pick the largest tile_c in {512, 256, 128} that divides the padded C.
    c_pad = _round_up(c, 128)
    tile_c = min(tile_c, c_pad)
    while c_pad % tile_c != 0:
        tile_c //= 2
    tile_c = max(tile_c, 128)

    # Point axis: pad to a multiple of 8 (sublane) and stream in tile_n rows.
    n_pad8 = _round_up(n, 8)
    tile_n = min(tile_n, n_pad8)
    n_pad = _round_up(n_pad8, tile_n)

    x = features
    if (n_pad, c_pad) != (n, c):
        # Zero padding is stats-safe: sums unaffected, divisor is the real N.
        x = jnp.pad(x, ((0, n_pad - n), (0, c_pad - c)))
    gamma2d = jnp.pad(gamma.reshape(1, c), ((0, 0), (0, c_pad - c)),
                      constant_values=1.0)
    beta2d = jnp.pad(beta.reshape(1, c), ((0, 0), (0, c_pad - c)))

    nc_tiles = c_pad // tile_c
    nn_tiles = n_pad // tile_n

    # ---- Pass 1: streamed stats -> fused per-channel scale / bias ----------
    stats_kernel = functools.partial(_stats_kernel, eps=float(eps), n_points=n)
    scale, bias = pl.pallas_call(
        stats_kernel,
        out_shape=(jax.ShapeDtypeStruct((1, c_pad), jnp.float32),
                   jax.ShapeDtypeStruct((1, c_pad), jnp.float32)),
        grid_spec=pltpu.PrefetchScalarGridSpec(
            num_scalar_prefetch=0,
            grid=(nc_tiles, nn_tiles),
            in_specs=[
                pl.BlockSpec((tile_n, tile_c), lambda j, i: (i, j)),
                pl.BlockSpec((1, tile_c), lambda j, i: (0, j)),  # gamma: no N re-DMA
                pl.BlockSpec((1, tile_c), lambda j, i: (0, j)),  # beta:  no N re-DMA
            ],
            out_specs=(
                pl.BlockSpec((1, tile_c), lambda j, i: (0, j)),
                pl.BlockSpec((1, tile_c), lambda j, i: (0, j)),
            ),
            scratch_shapes=[pltpu.VMEM((1, tile_c), jnp.float32),
                            pltpu.VMEM((1, tile_c), jnp.float32)],
        ),
        compiler_params=pltpu.CompilerParams(
            dimension_semantics=("parallel", "arbitrary")),
    )(x, gamma2d, beta2d)

    # ---- Pass 2: elementwise normalize (streaming, both axes parallel) -----
    y = pl.pallas_call(
        _normalize_kernel,
        out_shape=jax.ShapeDtypeStruct((n_pad, c_pad), out_dtype),
        grid_spec=pltpu.PrefetchScalarGridSpec(
            num_scalar_prefetch=0,
            grid=(nc_tiles, nn_tiles),
            in_specs=[
                pl.BlockSpec((tile_n, tile_c), lambda j, i: (i, j)),
                pl.BlockSpec((1, tile_c), lambda j, i: (0, j)),
                pl.BlockSpec((1, tile_c), lambda j, i: (0, j)),
            ],
            out_specs=pl.BlockSpec((tile_n, tile_c), lambda j, i: (i, j)),
        ),
        compiler_params=pltpu.CompilerParams(
            dimension_semantics=("parallel", "parallel")),
    )(x, scale, bias)

    if (n_pad, c_pad) != (n, c):
        y = y[:n, :c]
    return y


def _reference(features, gamma, beta, eps):
    x = features.astype(jnp.float32)
    mean = jnp.mean(x, axis=0, keepdims=True)
    var = jnp.mean((x - mean) ** 2, axis=0, keepdims=True)  # biased, like BN
    y = (x - mean) / jnp.sqrt(var + eps)
    return (y * gamma.reshape(1, -1) + beta.reshape(1, -1)).astype(features.dtype)


if __name__ == "__main__":
    key = jax.random.PRNGKey(0)
    k_feat, k_gamma, k_beta = jax.random.split(key, 3)

    # Sparse tensor with N=64 active points and C=128 feature channels.
    num_points = 64
    num_features = 128
    eps = 1e-5

    features = jax.random.normal(k_feat, (num_points, num_features), jnp.float32)
    # BatchNorm1d init is gamma=1, beta=0; perturb deterministically so the
    # affine path is exercised.
    gamma = 1.0 + 0.1 * jax.random.normal(k_gamma, (num_features,), jnp.float32)
    beta = 0.1 * jax.random.normal(k_beta, (num_features,), jnp.float32)

    out = minkowski_batch_norm(features, gamma, beta, eps=eps)
    out = jax.block_until_ready(out)

    ref = _reference(features, gamma, beta, eps)
    assert out.shape == ref.shape, "shape mismatch vs reference"
    assert jnp.allclose(out, ref, atol=1e-5, rtol=1e-5), "mismatch vs reference"

    print("KERNEL_OK")
</pallas_src>

<mosaic_0001>
module attributes {stable_mosaic.version = 11 : i64} {
  func.func @_stats_kernel(%arg0: i32, %arg1: i32, %arg2: memref<64x128xf32, #tpu.memory_space<vmem>>, %arg3: memref<1x128xf32, #tpu.memory_space<vmem>>, %arg4: memref<1x128xf32, #tpu.memory_space<vmem>>, %arg5: memref<1x128xf32, #tpu.memory_space<vmem>>, %arg6: memref<1x128xf32, #tpu.memory_space<vmem>>, %arg7: memref<1x128xf32, #tpu.memory_space<vmem>>, %arg8: memref<1x128xf32, #tpu.memory_space<vmem>>) attributes {dimension_semantics = [#tpu.dimension_semantics<parallel>, #tpu.dimension_semantics<arbitrary>], iteration_bounds = array<i64: 1, 1>, scalar_prefetch = 0 : i64, scratch_operands = 2 : i64, tpu.core_type = #tpu.core_type<tc>, window_params = [{transform_indices = @transform_0, window_bounds = array<i64: 64, 128>}, {transform_indices = @transform_1, window_bounds = array<i64: 1, 128>}, {transform_indices = @transform_2, window_bounds = array<i64: 1, 128>}, {transform_indices = @transform_3, window_bounds = array<i64: 1, 128>}, {transform_indices = @transform_4, window_bounds = array<i64: 1, 128>}]} {
    %c0_i32 = arith.constant 0 : i32
    %0 = arith.cmpi eq, %arg1, %c0_i32 : i32
    %1 = arith.extui %0 : i1 to i32
    %c0_i32_0 = arith.constant 0 : i32
    %2 = arith.cmpi ne, %1, %c0_i32_0 : i32
    scf.if %2 {
      %cst_13 = arith.constant 0.000000e+00 : f32
      %18 = vector.broadcast %cst_13 : f32 to vector<1x128xf32>
      %c0_14 = arith.constant 0 : index
      %c0_15 = arith.constant 0 : index
      %19 = vector.load %arg7[%c0_14, %c0_15] : memref<1x128xf32, #tpu.memory_space<vmem>>, vector<1x128xf32>
      tpu.vector_store %arg7[%c0_14, %c0_15], %18 {strides = array<i32>} : memref<1x128xf32, #tpu.memory_space<vmem>>, vector<1x128xf32>,
      %cst_16 = arith.constant 0.000000e+00 : f32
      %20 = vector.broadcast %cst_16 : f32 to vector<1x128xf32>
      %c0_17 = arith.constant 0 : index
      %c0_18 = arith.constant 0 : index
      %21 = vector.load %arg8[%c0_17, %c0_18] : memref<1x128xf32, #tpu.memory_space<vmem>>, vector<1x128xf32>
      tpu.vector_store %arg8[%c0_17, %c0_18], %20 {strides = array<i32>} : memref<1x128xf32, #tpu.memory_space<vmem>>, vector<1x128xf32>,
    } else {
    }
    %c0 = arith.constant 0 : index
    %c0_1 = arith.constant 0 : index
    %3 = vector.load %arg2[%c0, %c0_1] : memref<64x128xf32, #tpu.memory_space<vmem>>, vector<64x128xf32>
    %c0_2 = arith.constant 0 : index
    %c0_3 = arith.constant 0 : index
    %4 = vector.load %arg7[%c0_2, %c0_3] : memref<1x128xf32, #tpu.memory_space<vmem>>, vector<1x128xf32>
    %cst = arith.constant dense<0.000000e+00> : vector<128xf32>
    %5 = vector.multi_reduction <add>, %3, %cst [0] : vector<64x128xf32> to vector<128xf32>
    %6 = vector.shape_cast %5 : vector<128xf32> to vector<1x128xf32>
    %7 = arith.addf %4, %6 : vector<1x128xf32>
    %c0_4 = arith.constant 0 : index
    %c0_5 = arith.constant 0 : index
    %8 = vector.load %arg7[%c0_4, %c0_5] : memref<1x128xf32, #tpu.memory_space<vmem>>, vector<1x128xf32>
    tpu.vector_store %arg7[%c0_4, %c0_5], %7 {strides = array<i32>} : memref<1x128xf32, #tpu.memory_space<vmem>>, vector<1x128xf32>,
    %c0_6 = arith.constant 0 : index
    %c0_7 = arith.constant 0 : index
    %9 = vector.load %arg8[%c0_6, %c0_7] : memref<1x128xf32, #tpu.memory_space<vmem>>, vector<1x128xf32>
    %10 = arith.mulf %3, %3 : vector<64x128xf32>
    %cst_8 = arith.constant dense<0.000000e+00> : vector<128xf32>
    %11 = vector.multi_reduction <add>, %10, %cst_8 [0] : vector<64x128xf32> to vector<128xf32>
    %12 = vector.shape_cast %11 : vector<128xf32> to vector<1x128xf32>
    %13 = arith.addf %9, %12 : vector<1x128xf32>
    %c0_9 = arith.constant 0 : index
    %c0_10 = arith.constant 0 : index
    %14 = vector.load %arg8[%c0_9, %c0_10] : memref<1x128xf32, #tpu.memory_space<vmem>>, vector<1x128xf32>
    tpu.vector_store %arg8[%c0_9, %c0_10], %13 {strides = array<i32>} : memref<1x128xf32, #tpu.memory_space<vmem>>, vector<1x128xf32>,
    %c0_i32_11 = arith.constant 0 : i32
    %15 = arith.cmpi eq, %arg1, %c0_i32_11 : i32
    %16 = arith.extui %15 : i1 to i32
    %c0_i32_12 = arith.constant 0 : i32
    %17 = arith.cmpi ne, %16, %c0_i32_12 : i32
    scf.if %17 {
      %c0_13 = arith.constant 0 : index
      %c0_14 = arith.constant 0 : index
      %18 = vector.load %arg7[%c0_13, %c0_14] : memref<1x128xf32, #tpu.memory_space<vmem>>, vector<1x128xf32>
      %cst_15 = arith.constant 1.562500e-02 : f32
      %19 = vector.broadcast %cst_15 : f32 to vector<1x128xf32>
      %20 = arith.mulf %18, %19 : vector<1x128xf32>
      %c0_16 = arith.constant 0 : index
      %c0_17 = arith.constant 0 : index
      %21 = vector.load %arg8[%c0_16, %c0_17] : memref<1x128xf32, #tpu.memory_space<vmem>>, vector<1x128xf32>
      %cst_18 = arith.constant 1.562500e-02 : f32
      %22 = vector.broadcast %cst_18 : f32 to vector<1x128xf32>
      %23 = arith.mulf %21, %22 : vector<1x128xf32>
      %24 = arith.mulf %20, %20 : vector<1x128xf32>
      %25 = arith.subf %23, %24 : vector<1x128xf32>
      %cst_19 = arith.constant 0.000000e+00 : f32
      %26 = vector.broadcast %cst_19 : f32 to vector<1x128xf32>
      %27 = arith.maximumf %25, %26 : vector<1x128xf32>
      %cst_20 = arith.constant 9.99999974E-6 : f32
      %28 = vector.broadcast %cst_20 : f32 to vector<1x128xf32>
      %29 = arith.addf %27, %28 : vector<1x128xf32>
      %30 = math.rsqrt %29 : vector<1x128xf32>
      %c0_21 = arith.constant 0 : index
      %c0_22 = arith.constant 0 : index
      %31 = vector.load %arg3[%c0_21, %c0_22] : memref<1x128xf32, #tpu.memory_space<vmem>>, vector<1x128xf32>
      %32 = arith.mulf %31, %30 : vector<1x128xf32>
      %c0_23 = arith.constant 0 : index
      %c0_24 = arith.constant 0 : index
      %33 = vector.load %arg4[%c0_23, %c0_24] : memref<1x128xf32, #tpu.memory_space<vmem>>, vector<1x128xf32>
      %34 = arith.mulf %20, %32 : vector<1x128xf32>
      %35 = arith.subf %33, %34 : vector<1x128xf32>
      %c0_25 = arith.constant 0 : index
      %c0_26 = arith.constant 0 : index
      %36 = vector.load %arg5[%c0_25, %c0_26] : memref<1x128xf32, #tpu.memory_space<vmem>>, vector<1x128xf32>
      tpu.vector_store %arg5[%c0_25, %c0_26], %32 {strides = array<i32>} : memref<1x128xf32, #tpu.memory_space<vmem>>, vector<1x128xf32>,
      %c0_27 = arith.constant 0 : index
      %c0_28 = arith.constant 0 : index
      %37 = vector.load %arg6[%c0_27, %c0_28] : memref<1x128xf32, #tpu.memory_space<vmem>>, vector<1x128xf32>
      tpu.vector_store %arg6[%c0_27, %c0_28], %35 {strides = array<i32>} : memref<1x128xf32, #tpu.memory_space<vmem>>, vector<1x128xf32>,
    } else {
    }
    return
  }
  func.func @transform_0(%arg0: i32, %arg1: i32) -> (i32, i32) {
    %c0_i32 = arith.constant 0 : i32
    return %arg1, %arg0 : i32, i32
  }
  func.func @transform_1(%arg0: i32, %arg1: i32) -> (i32, i32) {
    %c0_i32 = arith.constant 0 : i32
    %c0_i32_0 = arith.constant 0 : i32
    return %c0_i32, %arg0 : i32, i32
  }
  func.func @transform_2(%arg0: i32, %arg1: i32) -> (i32, i32) {
    %c0_i32 = arith.constant 0 : i32
    %c0_i32_0 = arith.constant 0 : i32
    return %c0_i32, %arg0 : i32, i32
  }
  func.func @transform_3(%arg0: i32, %arg1: i32) -> (i32, i32) {
    %c0_i32 = arith.constant 0 : i32
    %c0_i32_0 = arith.constant 0 : i32
    return %c0_i32, %arg0 : i32, i32
  }
  func.func @transform_4(%arg0: i32, %arg1: i32) -> (i32, i32) {
    %c0_i32 = arith.constant 0 : i32
    %c0_i32_0 = arith.constant 0 : i32
    return %c0_i32, %arg0 : i32, i32
  }
}

</mosaic_0001>

<llo_original>
// kernel: tpu_custom_call.1
$region0: #{tpu_custom_call.1}
  #allocation0 [shape = 'u32[]', space=smem, size = 0x4, offset = 0x4, fixed_abs, tag = 'smem constant byte address 0x4 - core index']
  #allocation1 [shape = 'u32[144,128]{1,0:T(1,128)}', space=vmem, size = 0x12000, scoped, tag = 'internal scratch']
  #allocation2 [shape = 'f32[1,128]{1,0:T(1,128)}', space=vmem, size = 0x200, scoped, tag = 'scratch operand']
  #allocation3 [shape = 'f32[1,128]{1,0:T(1,128)}', space=vmem, size = 0x200, scoped, tag = 'scratch operand']
  %s0 = inlined_call_operand.hbm [shape: f32[64,128], index: 0, kind: input, shape index: {}]
  %s1 = inlined_call_operand.vmem [shape: f32[1,128], index: 1, kind: input, shape index: {}]
  %s2 = inlined_call_operand.vmem [shape: f32[1,128], index: 2, kind: input, shape index: {}]
  %s3 = inlined_call_operand.hbm [shape: f32[1,128], index: 3, kind: output, shape index: {0}]
  %s4 = inlined_call_operand.hbm [shape: f32[1,128], index: 4, kind: output, shape index: {1}]
  %5 = xla_tuple %s3, %s4
  %s6 = sld [smem:[#allocation0]]
  $region42: #{tpu_custom_call.1} parent=0
    _
  %s8 = ssub.s32 1, %s6
  %s9 = scalar_select 0, %s8, %s6
  $region1: #{tpu_custom_call.1} parent=0
    #allocation4 [shape = 'u8[32768]{0}', space=vmem, size = 0x8000, scoped, tag = 'input window, operand 0, single buffered']
    #allocation5 [shape = 's32[1]{0}', space=sflag, size = 0x4, scoped, tag = 'scoped memory for tpu_custom_call.1']
    #allocation6 [shape = 's32[1]{0}', space=sflag, size = 0x4, scoped, tag = 'scoped memory for tpu_custom_call.1']
    #allocation7 [shape = 'u8[512]{0}', space=vmem, size = 0x400, scoped, tag = 'output window, operand 0, single buffered']
    #allocation8 [shape = 'u8[512]{0}', space=vmem, size = 0x400, scoped, tag = 'output window, operand 1, single buffered']
    #allocation9 [shape = 's32[1]{0}', space=sflag, size = 0x4, scoped, tag = 'scoped memory for tpu_custom_call.1']
    %10 = vsyncpa [#allocation5], 0
    %11 = vsyncpa [#allocation6], 0
    %12 = vsyncpa [#allocation9], 0
    // Predicated region
    $region2: #{tpu_custom_call.1} parent=1 // pred_check
      _
    $region3: #{tpu_custom_call.1} parent=1 // pred_check_branch
      %14 = sbr.rel (0) target = $region5
    $region4: #{tpu_custom_call.1} parent=1 // pred_region
      %s16 = ssub.s32 1024, 1024
      %17 = vsyncadd [#allocation5], %s16
      %s18 = sshll.u32 [#allocation4], 4
      %s19 = int_to_ptr.vmem [resolvable:$true] %s18
      %24 = dma.hbm_to_vmem [thread:$0]  %s0, 1024, %s19, [#allocation5], 128, 128, 8
    $region5: #{tpu_custom_call.1} parent=1 // pred_fallthru
      _
    // Predicated region
    $region6: #{tpu_custom_call.1} parent=1 // pred_check
      _
    $region7: #{tpu_custom_call.1} parent=1 // pred_check_branch
      %26 = sbr.rel (0) target = $region9
    $region8: #{tpu_custom_call.1} parent=1 // pred_region
      _
    $region9: #{tpu_custom_call.1} parent=1 // pred_fallthru
      _
    // Predicated region
    $region10: #{tpu_custom_call.1} parent=1 // pred_check
      _
    $region11: #{tpu_custom_call.1} parent=1 // pred_check_branch
      %28 = sbr.rel (0) target = $region13
    $region12: #{tpu_custom_call.1} parent=1 // pred_region
      _
    $region13: #{tpu_custom_call.1} parent=1 // pred_fallthru
      _
    // Predicated region
    $region14: #{tpu_custom_call.1} parent=1 // pred_check
      _
    $region15: #{tpu_custom_call.1} parent=1 // pred_check_branch
      %30 = sbr.rel (0) target = $region17
    $region16: #{tpu_custom_call.1} parent=1 // pred_region
      %31 = dma.done [#allocation5], 1024
    $region17: #{tpu_custom_call.1} parent=1 // pred_fallthru
      _
    %p32 = scmp.eq.s32.totalorder 0, 0
    // Predicated region
    $region18: #{tpu_custom_call.1} parent=1 // pred_check
      %p33 = pneg %p32
    $region19: #{tpu_custom_call.1} parent=1 // pred_check_branch
      %35 = sbr.rel (%p33) target = $region21
    $region20: #{tpu_custom_call.1} parent=1 // pred_region
      %36 = vst [vmem:[#allocation2] sm:$0x1] 0.0
      %37 = vst [vmem:[#allocation3] sm:$0x1] 0.0
    $region21: #{tpu_custom_call.1} parent=1 // pred_fallthru
      _
    %v38 = vld [vmem:[#allocation4] sm:$0xff]
    %v39 = vld [vmem:[#allocation4 + $0x8] sm:$0xff]
    %v40 = vld [vmem:[#allocation4 + $0x10] sm:$0xff]
    %v41 = vld [vmem:[#allocation4 + $0x18] sm:$0xff]
    %v42 = vld [vmem:[#allocation4 + $0x20] sm:$0xff]
    %v43 = vld [vmem:[#allocation4 + $0x28] sm:$0xff]
    %v44 = vld [vmem:[#allocation4 + $0x30] sm:$0xff]
    %v45 = vld [vmem:[#allocation4 + $0x38] sm:$0xff]
    %v46 = vld [vmem:[#allocation2] sm:$0x1]
    %v47 = vadd.f32 %v38, %v39
    %v48 = vadd.f32 %v47, %v40
    %v49 = vadd.f32 %v48, %v41
    %v50 = vadd.f32 %v49, %v42
    %v51 = vadd.f32 %v50, %v43
    %v52 = vadd.f32 %v51, %v44
    %v53 = vadd.f32 %v52, %v45
    %v54 = vrot.slane %v53, 4
    %v55 = vadd.f32 %v53, %v54
    %v56 = vrot.slane %v55, 2
    %v57 = vadd.f32 %v55, %v56
    %v58 = vrot.slane %v57, 1
    %v59 = vadd.f32 %v57, %v58
    %v60 = vadd.f32 %v46, %v59
    %61 = vst [vmem:[#allocation2] sm:$0x1] %v60
    %v62 = vld [vmem:[#allocation3] sm:$0x1]
    %v63 = vmul.f32 %v38, %v38
    %v64 = vmul.f32 %v39, %v39
    %v65 = vmul.f32 %v40, %v40
    %v66 = vmul.f32 %v41, %v41
    %v67 = vmul.f32 %v42, %v42
    %v68 = vmul.f32 %v43, %v43
    %v69 = vmul.f32 %v44, %v44
    %v70 = vmul.f32 %v45, %v45
    %v71 = vadd.f32 %v63, %v64
    %v72 = vadd.f32 %v71, %v65
    %v73 = vadd.f32 %v72, %v66
    %v74 = vadd.f32 %v73, %v67
    %v75 = vadd.f32 %v74, %v68
    %v76 = vadd.f32 %v75, %v69
    %v77 = vadd.f32 %v76, %v70
    %v78 = vrot.slane %v77, 4
    %v79 = vadd.f32 %v77, %v78
    %v80 = vrot.slane %v79, 2
    %v81 = vadd.f32 %v79, %v80
    %v82 = vrot.slane %v81, 1
    %v83 = vadd.f32 %v81, %v82
    %v84 = vadd.f32 %v62, %v83
    %85 = vst [vmem:[#allocation3] sm:$0x1] %v84
    // Predicated region
    $region22: #{tpu_custom_call.1} parent=1 // pred_check
      %p86 = pneg %p32
    $region23: #{tpu_custom_call.1} parent=1 // pred_check_branch
      %88 = sbr.rel (%p86) target = $region25
    $region24: #{tpu_custom_call.1} parent=1 // pred_region
      %v89 = vld [vmem:[#allocation2] sm:$0x1]
      %v90 = vmul.f32 %v89, 0.015625
      %v91 = vld [vmem:[#allocation3] sm:$0x1]
      %v92 = vmul.f32 %v91, 0.015625
      %v93 = vmul.f32 %v90, %v90
      %v94 = vsub.f32 %v92, %v93
      %v95 = vmax.f32 %v94, 0.0
      %v96 = vadd.f32 %v95, 1e-05
      %v97 = vrsqrt.pop %v96
      %v98 = vld [vmem:[%s1] sm:$0x1]
      %v99 = vmul.f32 %v98, %v97
      %v100 = vld [vmem:[%s2] sm:$0x1]
      %v101 = vmul.f32 %v90, %v99
      %v102 = vsub.f32 %v100, %v101
      %103 = vst [vmem:[#allocation7] sm:$0x1] %v99
      %104 = vst [vmem:[#allocation8] sm:$0x1] %v102
    $region25: #{tpu_custom_call.1} parent=1 // pred_fallthru
      _
    // Predicated region
    $region26: #{tpu_custom_call.1} parent=1 // pred_check
      _
    $region27: #{tpu_custom_call.1} parent=1 // pred_check_branch
      %106 = sbr.rel (0) target = $region29
    $region28: #{tpu_custom_call.1} parent=1 // pred_region
      %s108 = ssub.s32 16, 16
      %109 = vsyncadd [#allocation6], %s108
      %s111 = sshll.u32 [#allocation7], 4
      %s112 = int_to_ptr.vmem [resolvable:$true] %s111
      %114 = dma.vmem_to_hbm [thread:$0]  %s112, 16, %s3, [#allocation6]
    $region29: #{tpu_custom_call.1} parent=1 // pred_fallthru
      _
    // Predicated region
    $region30: #{tpu_custom_call.1} parent=1 // pred_check
      _
    $region31: #{tpu_custom_call.1} parent=1 // pred_check_branch
      %116 = sbr.rel (0) target = $region33
    $region32: #{tpu_custom_call.1} parent=1 // pred_region
      %s118 = ssub.s32 16, 16
      %119 = vsyncadd [#allocation9], %s118
      %s121 = sshll.u32 [#allocation8], 4
      %s122 = int_to_ptr.vmem [resolvable:$true] %s121
      %124 = dma.vmem_to_hbm [thread:$0]  %s122, 16, %s4, [#allocation9]
    $region33: #{tpu_custom_call.1} parent=1 // pred_fallthru
      _
    // Predicated region
    $region34: #{tpu_custom_call.1} parent=1 // pred_check
      _
    $region35: #{tpu_custom_call.1} parent=1 // pred_check_branch
      %126 = sbr.rel (0) target = $region37
    $region36: #{tpu_custom_call.1} parent=1 // pred_region
      %127 = dma.done [#allocation6], 16
    $region37: #{tpu_custom_call.1} parent=1 // pred_fallthru
      _
    // Predicated region
    $region38: #{tpu_custom_call.1} parent=1 // pred_check
      _
    $region39: #{tpu_custom_call.1} parent=1 // pred_check_branch
      %129 = sbr.rel (0) target = $region41
    $region40: #{tpu_custom_call.1} parent=1 // pred_region
      %130 = dma.done [#allocation9], 16
    $region41: #{tpu_custom_call.1} parent=1 // pred_fallthru
      _
    %131 = vsyncpa [#allocation5], 1
    %132 = vsyncpa [#allocation6], 1
    %133 = vsyncpa [#allocation9], 1

</llo_original>
